<compile_context>
chip_gen: v6e
topology: v6e:2x2x1
jax: 0.10.0
libtpu: 0.0.40
codegen_flags: <defaults>
</compile_context>

<pallas_src>
import functools

import jax
import jax.numpy as jnp
from jax.experimental import pallas as pl
from jax.experimental.pallas import tpu as pltpu


def _round_up(x, m):
    return ((x + m - 1) // m) * m


def _cdiv(a, b):
    return (a + b - 1) // b


# ---------------------------------------------------------------------------
# Kernels
# ---------------------------------------------------------------------------

def _llr_kernel_fused(x_ref, theta_ref, gammaT_ref, bias_ref, out_ref):
    """Single-K path: out_tile = (x_tile * theta) @ gamma.T + bias."""
    xs = x_ref[...] * theta_ref[...]                       # [tm, F] * [1, F]
    acc = jnp.dot(xs, gammaT_ref[...],                     # [tm, F] @ [F, T_pad]
                  preferred_element_type=jnp.float32)
    out_ref[...] = (acc + bias_ref[...]).astype(out_ref.dtype)


def _llr_kernel_ktiled_resident(tk, x_ref, theta_ref, gammaT_ref, bias_ref,
                                out_ref, acc_ref):
    """K-tiled path; gamma.T / theta fully VMEM-resident, sliced in-kernel."""
    k = pl.program_id(1)

    @pl.when(k == 0)
    def _():
        acc_ref[...] = jnp.zeros_like(acc_ref)

    off = pl.multiple_of(k * tk, 128)
    xs = x_ref[...] * theta_ref[:, pl.ds(off, tk)]         # [tm, tk] * [1, tk]
    acc_ref[...] += jnp.dot(xs, gammaT_ref[pl.ds(off, tk), :],
                            preferred_element_type=jnp.float32)

    @pl.when(k == pl.num_programs(1) - 1)
    def _():
        out_ref[...] = (acc_ref[...] + bias_ref[...]).astype(out_ref.dtype)


def _llr_kernel_ktiled_streamed(x_ref, theta_ref, gammaT_ref, bias_ref,
                                out_ref, acc_ref):
    """K-tiled path; gamma.T K-slices streamed from HBM."""
    k = pl.program_id(1)

    @pl.when(k == 0)
    def _():
        acc_ref[...] = jnp.zeros_like(acc_ref)

    xs = x_ref[...] * theta_ref[...]                       # [tm, tk] * [1, tk]
    acc_ref[...] += jnp.dot(xs, gammaT_ref[...],           # [tm, tk] @ [tk, T_pad]
                            preferred_element_type=jnp.float32)

    @pl.when(k == pl.num_programs(1) - 1)
    def _():
        out_ref[...] = (acc_ref[...] + bias_ref[...]).astype(out_ref.dtype)


# ---------------------------------------------------------------------------
# Tile / path planning
# ---------------------------------------------------------------------------

def _plan(B, F, T, *, max_tm, max_tk, vmem_budget, resident_budget):
    T_pad = _round_up(T, 128)

    # Batch tiling: hug B, keep >= 2 tiles when B allows (v7x has 2 TCs).
    nb = max(_cdiv(B, max_tm), 2 if B > 8 else 1)
    tm = _round_up(_cdiv(B, nb), 8)
    nb = _cdiv(B, tm)
    B_pad = nb * tm

    # Feature (reduction) tiling: collapse to a single K tile if the
    # double-buffered working set fits the VMEM budget.
    def streamed_bytes(tk, ktiled):
        b = 2 * (tm * tk + tk * T_pad + tm * T_pad) * 4    # x, gamma.T, out
        b += 2 * (tk + T_pad) * 4                          # theta, bias
        if ktiled:
            b += tm * T_pad * 4                            # fp32 accumulator
        return b

    nk = 1
    tk = _round_up(F, 128)
    while (tk > max_tk or streamed_bytes(tk, nk > 1) > vmem_budget) and tk > 128:
        nk += 1
        tk = _round_up(_cdiv(F, nk), 128)
    nk = _cdiv(F, tk)
    F_pad = nk * tk

    # For the K-tiled path, keep gamma.T / theta resident if they fit.
    resident = False
    if nk > 1 and resident_budget > 0:
        resident_bytes = (2 * tm * tk                       # streamed x tiles
                          + 2 * (F_pad * T_pad + F_pad)     # resident gamma.T, theta
                          + 2 * (tm * T_pad + T_pad)        # out, bias
                          + tm * T_pad) * 4                 # fp32 accumulator
        resident = resident_bytes <= resident_budget

    return tm, nb, B_pad, tk, nk, F_pad, T_pad, resident


# ---------------------------------------------------------------------------
# Wrapper
# ---------------------------------------------------------------------------

def llr_forward(x, theta, gamma, bias, *, max_tm=512, max_tk=2048,
                vmem_budget=28 * 1024 * 1024,
                resident_budget=16 * 1024 * 1024):
    """x: [B, F], theta: [F], gamma: [T, F], bias: [T] -> out: [B, T]."""
    B, F = x.shape
    T, F2 = gamma.shape
    assert F == F2 and theta.shape == (F,) and bias.shape == (T,)
    dtype = x.dtype

    tm, nb, B_pad, tk, nk, F_pad, T_pad, resident = _plan(
        B, F, T, max_tm=max_tm, max_tk=max_tk,
        vmem_budget=vmem_budget, resident_budget=resident_budget)

    # Zero-pad. Padded theta / gamma.T rows and bias entries stay zero, so
    # padded output rows/columns are exactly zero and sliced away below.
    x_p = jnp.pad(x, ((0, B_pad - B), (0, F_pad - F)))
    gammaT_p = jnp.pad(gamma.T, ((0, F_pad - F), (0, T_pad - T)))
    theta_p = jnp.pad(theta, (0, F_pad - F)).reshape(1, F_pad)
    bias_p = jnp.pad(bias, (0, T_pad - T)).reshape(1, T_pad)

    cparams = pltpu.CompilerParams(
        dimension_semantics=("parallel",) if nk == 1 else ("parallel", "arbitrary"),
        vmem_limit_bytes=48 * 1024 * 1024,
    )

    if nk == 1:
        # Single-K path: gamma.T / theta / bias resident, one dot per batch tile.
        out = pl.pallas_call(
            _llr_kernel_fused,
            out_shape=jax.ShapeDtypeStruct((B_pad, T_pad), dtype),
            grid=(nb,),
            in_specs=[
                pl.BlockSpec((tm, F_pad), lambda i: (i, 0)),       # x tile
                pl.BlockSpec((1, F_pad), lambda i: (0, 0)),        # theta
                pl.BlockSpec((F_pad, T_pad), lambda i: (0, 0)),    # gamma.T
                pl.BlockSpec((1, T_pad), lambda i: (0, 0)),        # bias
            ],
            out_specs=pl.BlockSpec((tm, T_pad), lambda i: (i, 0)),
            compiler_params=cparams,
        )(x_p, theta_p, gammaT_p, bias_p)
    elif resident:
        # K-tiled, gamma.T / theta resident in VMEM across the whole grid.
        out = pl.pallas_call(
            functools.partial(_llr_kernel_ktiled_resident, tk),
            out_shape=jax.ShapeDtypeStruct((B_pad, T_pad), dtype),
            grid=(nb, nk),
            in_specs=[
                pl.BlockSpec((tm, tk), lambda i, k: (i, k)),       # x tile
                pl.BlockSpec((1, F_pad), lambda i, k: (0, 0)),     # theta (resident)
                pl.BlockSpec((F_pad, T_pad), lambda i, k: (0, 0)), # gamma.T (resident)
                pl.BlockSpec((1, T_pad), lambda i, k: (0, 0)),     # bias
            ],
            out_specs=pl.BlockSpec((tm, T_pad), lambda i, k: (i, 0)),
            scratch_shapes=[pltpu.VMEM((tm, T_pad), jnp.float32)],
            compiler_params=cparams,
        )(x_p, theta_p, gammaT_p, bias_p)
    else:
        # K-tiled, gamma.T K-slices streamed (very large F * T case).
        out = pl.pallas_call(
            _llr_kernel_ktiled_streamed,
            out_shape=jax.ShapeDtypeStruct((B_pad, T_pad), dtype),
            grid=(nb, nk),
            in_specs=[
                pl.BlockSpec((tm, tk), lambda i, k: (i, k)),       # x tile
                pl.BlockSpec((1, tk), lambda i, k: (0, k)),        # theta slice
                pl.BlockSpec((tk, T_pad), lambda i, k: (k, 0)),    # gamma.T slice
                pl.BlockSpec((1, T_pad), lambda i, k: (0, 0)),     # bias
            ],
            out_specs=pl.BlockSpec((tm, T_pad), lambda i, k: (i, 0)),
            scratch_shapes=[pltpu.VMEM((tm, T_pad), jnp.float32)],
            compiler_params=cparams,
        )(x_p, theta_p, gammaT_p, bias_p)

    return out[:B, :T]


def _reference(x, theta, gamma, bias):
    return x @ (theta * gamma).T + bias


if __name__ == "__main__":
    # --- Small deterministic example matching the module:
    #     batch=8, n_features=32, n_tasks=4 (fused single-tile path). ---
    kx, kt, kg, kb = jax.random.split(jax.random.PRNGKey(0), 4)
    B, F, T = 8, 32, 4
    x = jax.random.normal(kx, (B, F), dtype=jnp.float32)
    theta = jax.random.normal(kt, (F,), dtype=jnp.float32)
    gamma = jax.random.normal(kg, (T, F), dtype=jnp.float32)
    bias = jax.random.normal(kb, (T,), dtype=jnp.float32)

    out = jax.block_until_ready(llr_forward(x, theta, gamma, bias))
    ref = _reference(x, theta, gamma, bias)
    assert out.shape == (B, T)
    assert jnp.allclose(out, ref, atol=1e-3, rtol=1e-3), "mismatch (small/fused)"

    # --- Ragged shape: exercises shape-hugging tiles and 2 batch tiles. ---
    kx2, kt2, kg2, kb2 = jax.random.split(jax.random.PRNGKey(1), 4)
    B2, F2, T2 = 300, 700, 10
    x2 = jax.random.normal(kx2, (B2, F2), dtype=jnp.float32)
    theta2 = jax.random.normal(kt2, (F2,), dtype=jnp.float32)
    gamma2 = jax.random.normal(kg2, (T2, F2), dtype=jnp.float32)
    bias2 = jax.random.normal(kb2, (T2,), dtype=jnp.float32)
    ref2 = _reference(x2, theta2, gamma2, bias2)

    out2 = jax.block_until_ready(llr_forward(x2, theta2, gamma2, bias2))
    assert out2.shape == (B2, T2)
    assert jnp.allclose(out2, ref2, atol=1e-2, rtol=1e-3), "mismatch (fused, ragged)"

    # --- Force the K-tiled resident-gamma path (small max_tk). ---
    out3 = jax.block_until_ready(
        llr_forward(x2, theta2, gamma2, bias2, max_tk=256))
    assert jnp.allclose(out3, ref2, atol=1e-2, rtol=1e-3), "mismatch (ktiled resident)"

    # --- Force the K-tiled streamed-gamma path (resident budget off). ---
    out4 = jax.block_until_ready(
        llr_forward(x2, theta2, gamma2, bias2, max_tk=256, resident_budget=0))
    assert jnp.allclose(out4, ref2, atol=1e-2, rtol=1e-3), "mismatch (ktiled streamed)"

    print("KERNEL_OK")
</pallas_src>

<mosaic_0001>
module attributes {stable_mosaic.version = 11 : i64} {
  func.func @_llr_kernel_fused(%arg0: i32, %arg1: memref<8x128xf32, #tpu.memory_space<vmem>>, %arg2: memref<1x128xf32, #tpu.memory_space<vmem>>, %arg3: memref<128x128xf32, #tpu.memory_space<vmem>>, %arg4: memref<1x128xf32, #tpu.memory_space<vmem>>, %arg5: memref<8x128xf32, #tpu.memory_space<vmem>>) attributes {dimension_semantics = [#tpu.dimension_semantics<parallel>], iteration_bounds = array<i64: 1>, scalar_prefetch = 0 : i64, scratch_operands = 0 : i64, tpu.core_type = #tpu.core_type<tc>, window_params = [{transform_indices = @transform_0, window_bounds = array<i64: 8, 128>}, {pipeline_mode = #tpu.pipeline_mode<synchronous>, transform_indices = @transform_1, window_bounds = array<i64: 1, 128>}, {pipeline_mode = #tpu.pipeline_mode<synchronous>, transform_indices = @transform_2, window_bounds = array<i64: 128, 128>}, {pipeline_mode = #tpu.pipeline_mode<synchronous>, transform_indices = @transform_3, window_bounds = array<i64: 1, 128>}, {transform_indices = @transform_4, window_bounds = array<i64: 8, 128>}]} {
    %c0 = arith.constant 0 : index
    %c0_0 = arith.constant 0 : index
    %0 = vector.load %arg1[%c0, %c0_0] : memref<8x128xf32, #tpu.memory_space<vmem>>, vector<8x128xf32>
    %c0_1 = arith.constant 0 : index
    %c0_2 = arith.constant 0 : index
    %1 = vector.load %arg2[%c0_1, %c0_2] : memref<1x128xf32, #tpu.memory_space<vmem>>, vector<1x128xf32>
    %2 = vector.broadcast %1 : vector<1x128xf32> to vector<8x128xf32>
    %3 = arith.mulf %0, %2 : vector<8x128xf32>
    %c0_3 = arith.constant 0 : index
    %c0_4 = arith.constant 0 : index
    %4 = vector.load %arg3[%c0_3, %c0_4] : memref<128x128xf32, #tpu.memory_space<vmem>>, vector<128x128xf32>
    %cst = arith.constant dense<0.000000e+00> : vector<8x128xf32>
    %5 = tpu.matmul %3, %4, %cst {dimension_numbers = #tpu.dot_dimension_numbers<[1], [0], [0], [1], [0, 0, 1, 1], [], []>} : vector<8x128xf32>, vector<128x128xf32>, vector<8x128xf32> -> vector<8x128xf32>
    %c0_5 = arith.constant 0 : index
    %c0_6 = arith.constant 0 : index
    %6 = vector.load %arg4[%c0_5, %c0_6] : memref<1x128xf32, #tpu.memory_space<vmem>>, vector<1x128xf32>
    %7 = vector.broadcast %6 : vector<1x128xf32> to vector<8x128xf32>
    %8 = arith.addf %5, %7 : vector<8x128xf32>
    %c0_7 = arith.constant 0 : index
    %c0_8 = arith.constant 0 : index
    %9 = vector.load %arg5[%c0_7, %c0_8] : memref<8x128xf32, #tpu.memory_space<vmem>>, vector<8x128xf32>
    tpu.vector_store %arg5[%c0_7, %c0_8], %8 {strides = array<i32>} : memref<8x128xf32, #tpu.memory_space<vmem>>, vector<8x128xf32>,
    return
  }
  func.func @transform_0(%arg0: i32) -> (i32, i32) {
    %c0_i32 = arith.constant 0 : i32
    %c0_i32_0 = arith.constant 0 : i32
    return %arg0, %c0_i32 : i32, i32
  }
  func.func @transform_1(%arg0: i32) -> (i32, i32) {
    %c0_i32 = arith.constant 0 : i32
    %c0_i32_0 = arith.constant 0 : i32
    %c0_i32_1 = arith.constant 0 : i32
    return %c0_i32, %c0_i32_0 : i32, i32
  }
  func.func @transform_2(%arg0: i32) -> (i32, i32) {
    %c0_i32 = arith.constant 0 : i32
    %c0_i32_0 = arith.constant 0 : i32
    %c0_i32_1 = arith.constant 0 : i32
    return %c0_i32, %c0_i32_0 : i32, i32
  }
  func.func @transform_3(%arg0: i32) -> (i32, i32) {
    %c0_i32 = arith.constant 0 : i32
    %c0_i32_0 = arith.constant 0 : i32
    %c0_i32_1 = arith.constant 0 : i32
    return %c0_i32, %c0_i32_0 : i32, i32
  }
  func.func @transform_4(%arg0: i32) -> (i32, i32) {
    %c0_i32 = arith.constant 0 : i32
    %c0_i32_0 = arith.constant 0 : i32
    return %arg0, %c0_i32 : i32, i32
  }
}

</mosaic_0001>

<llo_original>
// kernel: tpu_custom_call.1
$region0: #{tpu_custom_call.1}
  #allocation0 [shape = 'u32[]', space=smem, size = 0x4, offset = 0x4, fixed_abs, tag = 'smem constant byte address 0x4 - core index']
  #allocation1 [shape = 'u32[144,128]{1,0:T(1,128)}', space=vmem, size = 0x12000, scoped, tag = 'internal scratch']
  %s0 = inlined_call_operand.hbm [shape: f32[8,128], index: 0, kind: input, shape index: {}]
  %s1 = inlined_call_operand.vmem [shape: f32[1,128], index: 1, kind: input, shape index: {}]
  %s2 = inlined_call_operand.hbm [shape: f32[128,128], index: 2, kind: input, shape index: {}]
  %s3 = inlined_call_operand.vmem [shape: f32[1,128], index: 3, kind: input, shape index: {}]
  %s4 = inlined_call_operand.hbm [shape: f32[8,128], index: 4, kind: output, shape index: {}]
  %s5 = sld [smem:[#allocation0]]
  $region34: #{tpu_custom_call.1} parent=0
    _
  %s7 = ssub.s32 1, %s5
  %s8 = scalar_select 0, %s7, %s5
  $region1: #{tpu_custom_call.1} parent=0
    #allocation2 [shape = 'u8[4096]{0}', space=vmem, size = 0x1000, scoped, tag = 'input window, operand 0, single buffered']
    #allocation3 [shape = 's32[1]{0}', space=sflag, size = 0x4, scoped, tag = 'scoped memory for tpu_custom_call.1']
    #allocation4 [shape = 's32[1]{0}', space=sflag, size = 0x4, scoped, tag = 'scoped memory for tpu_custom_call.1']
    #allocation5 [shape = 'u8[65536]{0}', space=vmem, size = 0x10000, scoped, tag = 'input window, operand 2, single buffered']
    #allocation6 [shape = 's32[1]{0}', space=sflag, size = 0x4, scoped, tag = 'scoped memory for tpu_custom_call.1']
    #allocation7 [shape = 'u8[4096]{0}', space=vmem, size = 0x1000, scoped, tag = 'output window, operand 0, single buffered']
    %9 = vsyncpa [#allocation3], 0
    %10 = vsyncpa [#allocation6], 0
    %11 = vsyncpa [#allocation4], 0
    // Predicated region
    $region2: #{tpu_custom_call.1} parent=1 // pred_check
      _
    $region3: #{tpu_custom_call.1} parent=1 // pred_check_branch
      %13 = sbr.rel (0) target = $region5
    $region4: #{tpu_custom_call.1} parent=1 // pred_region
      %s15 = ssub.s32 128, 128
      %16 = vsyncadd [#allocation3], %s15
      %s18 = sshll.u32 [#allocation2], 4
      %s19 = int_to_ptr.vmem [resolvable:$true] %s18
      %21 = dma.hbm_to_vmem [thread:$0]  %s0, 128, %s19, [#allocation3]
    $region5: #{tpu_custom_call.1} parent=1 // pred_fallthru
      _
    // Predicated region
    $region6: #{tpu_custom_call.1} parent=1 // pred_check
      _
    $region7: #{tpu_custom_call.1} parent=1 // pred_check_branch
      %23 = sbr.rel (0) target = $region9
    $region8: #{tpu_custom_call.1} parent=1 // pred_region
      _
    $region9: #{tpu_custom_call.1} parent=1 // pred_fallthru
      _
    // Predicated region
    $region10: #{tpu_custom_call.1} parent=1 // pred_check
      _
    $region11: #{tpu_custom_call.1} parent=1 // pred_check_branch
      %25 = sbr.rel (0) target = $region13
    $region12: #{tpu_custom_call.1} parent=1 // pred_region
      %s27 = ssub.s32 2048, 2048
      %28 = vsyncadd [#allocation6], %s27
      %s29 = sshll.u32 [#allocation5], 4
      %s30 = int_to_ptr.vmem [resolvable:$true] %s29
      %35 = dma.hbm_to_vmem [thread:$0]  %s2, 2048, %s30, [#allocation6], 128, 128, 8
    $region13: #{tpu_custom_call.1} parent=1 // pred_fallthru
      _
    // Predicated region
    $region14: #{tpu_custom_call.1} parent=1 // pred_check
      _
    $region15: #{tpu_custom_call.1} parent=1 // pred_check_branch
      %37 = sbr.rel (0) target = $region17
    $region16: #{tpu_custom_call.1} parent=1 // pred_region
      _
    $region17: #{tpu_custom_call.1} parent=1 // pred_fallthru
      _
    // Predicated region
    $region18: #{tpu_custom_call.1} parent=1 // pred_check
      _
    $region19: #{tpu_custom_call.1} parent=1 // pred_check_branch
      %39 = sbr.rel (0) target = $region21
    $region20: #{tpu_custom_call.1} parent=1 // pred_region
      %40 = dma.done [#allocation3], 128
    $region21: #{tpu_custom_call.1} parent=1 // pred_fallthru
      _
    // Predicated region
    $region22: #{tpu_custom_call.1} parent=1 // pred_check
      _
    $region23: #{tpu_custom_call.1} parent=1 // pred_check_branch
      %42 = sbr.rel (0) target = $region25
    $region24: #{tpu_custom_call.1} parent=1 // pred_region
      %43 = dma.done [#allocation6], 2048
    $region25: #{tpu_custom_call.1} parent=1 // pred_fallthru
      _
    %v44 = vld [vmem:[#allocation2] sm:$0xff]
    %v45 = vld [vmem:[%s1] sm:$0x1]
    %v47 = vlaneseq
    %v48 = vshrl.u32 %v47, 7
    %v49 = vsub.s32 0, %v48
    %v50 = vrot.slane %v45, %v49
    %v52 = vmul.f32 %v44, %v50
    %v53 = vld [vmem:[#allocation5] sm:$0xff]
    %v54 = vld [vmem:[#allocation5 + $0x8] sm:$0xff]
    %v55 = vld [vmem:[#allocation5 + $0x10] sm:$0xff]
    %v56 = vld [vmem:[#allocation5 + $0x18] sm:$0xff]
    %v57 = vld [vmem:[#allocation5 + $0x20] sm:$0xff]
    %v58 = vld [vmem:[#allocation5 + $0x28] sm:$0xff]
    %v59 = vld [vmem:[#allocation5 + $0x30] sm:$0xff]
    %v60 = vld [vmem:[#allocation5 + $0x38] sm:$0xff]
    %v61 = vld [vmem:[#allocation5 + $0x40] sm:$0xff]
    %v62 = vld [vmem:[#allocation5 + $0x48] sm:$0xff]
    %v63 = vld [vmem:[#allocation5 + $0x50] sm:$0xff]
    %v64 = vld [vmem:[#allocation5 + $0x58] sm:$0xff]
    %v65 = vld [vmem:[#allocation5 + $0x60] sm:$0xff]
    %v66 = vld [vmem:[#allocation5 + $0x68] sm:$0xff]
    %v67 = vld [vmem:[#allocation5 + $0x70] sm:$0xff]
    %v68 = vld [vmem:[#allocation5 + $0x78] sm:$0xff]
    %v69 = vld [vmem:[%s3] sm:$0x1]
    %v71 = vlaneseq
    %v72 = vshrl.u32 %v71, 7
    %v73 = vsub.s32 0, %v72
    %v74 = vrot.slane %v69, %v73
    %76 = vmatprep.subr.mxu0 0.0
    %77 = vmatpush1.msra.mxu0 %v68
    %78 = vmatprep.subr.mxu0 0.0
    %79 = vmatpush1.msra.mxu0 %v67
    %80 = vmatprep.subr.mxu0 0.0
    %81 = vmatpush1.msra.mxu0 %v66
    %82 = vmatprep.subr.mxu0 0.0
    %83 = vmatpush1.msra.mxu0 %v65
    %84 = vmatprep.subr.mxu0 0.0
    %85 = vmatpush1.msra.mxu0 %v64
    %86 = vmatprep.subr.mxu0 0.0
    %87 = vmatpush1.msra.mxu0 %v63
    %88 = vmatprep.subr.mxu0 0.0
    %89 = vmatpush1.msra.mxu0 %v62
    %90 = vmatprep.subr.mxu0 0.0
    %91 = vmatpush1.msra.mxu0 %v61
    %92 = vmatprep.subr.mxu0 0.0
    %93 = vmatpush1.msra.mxu0 %v60
    %94 = vmatprep.subr.mxu0 0.0
    %95 = vmatpush1.msra.mxu0 %v59
    %96 = vmatprep.subr.mxu0 0.0
    %97 = vmatpush1.msra.mxu0 %v58
    %98 = vmatprep.subr.mxu0 0.0
    %99 = vmatpush1.msra.mxu0 %v57
    %100 = vmatprep.subr.mxu0 0.0
    %101 = vmatpush1.msra.mxu0 %v56
    %102 = vmatprep.subr.mxu0 0.0
    %103 = vmatpush1.msra.mxu0 %v55
    %104 = vmatprep.subr.mxu0 0.0
    %105 = vmatpush1.msra.mxu0 %v54
    %106 = vmatprep.subr.mxu0 0.0
    %107 = vmatpush1.msra.mxu0 %v53
    %108 = vmatprep.subr.mxu0 0.0
    %109 = vmatpush2.msra.mxu0 0.0
    %110 = vmatprep.subr.mxu0 0.0
    %111 = vmatpush2.msra.mxu0 0.0
    %112 = vmatprep.subr.mxu0 0.0
    %113 = vmatpush2.msra.mxu0 0.0
    %114 = vmatprep.subr.mxu0 0.0
    %115 = vmatpush2.msra.mxu0 0.0
    %116 = vmatprep.subr.mxu0 0.0
    %117 = vmatpush2.msra.mxu0 0.0
    %118 = vmatprep.subr.mxu0 0.0
    %119 = vmatpush2.msra.mxu0 0.0
    %120 = vmatprep.subr.mxu0 0.0
    %121 = vmatpush2.msra.mxu0 0.0
    %122 = vmatprep.subr.mxu0 0.0
    %123 = vmatpush2.msra.mxu0 0.0
    %124 = vmatprep.subr.mxu0 0.0
    %125 = vmatpush2.msra.mxu0 0.0
    %126 = vmatprep.subr.mxu0 0.0
    %127 = vmatpush2.msra.mxu0 0.0
    %128 = vmatprep.subr.mxu0 0.0
    %129 = vmatpush2.msra.mxu0 0.0
    %130 = vmatprep.subr.mxu0 0.0
    %131 = vmatpush2.msra.mxu0 0.0
    %132 = vmatprep.subr.mxu0 0.0
    %133 = vmatpush2.msra.mxu0 0.0
    %134 = vmatprep.subr.mxu0 0.0
    %135 = vmatpush2.msra.mxu0 0.0
    %136 = vmatprep.subr.mxu0 0.0
    %137 = vmatpush2.msra.mxu0 0.0
    %138 = vmatprep.subr.mxu0 0.0
    %139 = vmatpush2.msra.mxu0 0.0
    %140 = vmatprep.mubr.f32.mxu0 0.0
    %141 = vmatmul.mubr.f32.gmra.mxu0 %v52
    %v142 = vpop.f32.mrf.mxu0
    %v143 = vadd.f32 %v74, %v142
    %v144 = vpop.f32.mrf.mxu0
    %145 = vdwg.mxu0
    %146 = vst [vmem:[#allocation7] sm:$0xff] %v143
    // Predicated region
    $region26: #{tpu_custom_call.1} parent=1 // pred_check
      _
    $region27: #{tpu_custom_call.1} parent=1 // pred_check_branch
      %148 = sbr.rel (0) target = $region29
    $region28: #{tpu_custom_call.1} parent=1 // pred_region
      %s150 = ssub.s32 128, 128
      %151 = vsyncadd [#allocation4], %s150
      %s153 = sshll.u32 [#allocation7], 4
      %s154 = int_to_ptr.vmem [resolvable:$true] %s153
      %156 = dma.vmem_to_hbm [thread:$0]  %s154, 128, %s4, [#allocation4]
    $region29: #{tpu_custom_call.1} parent=1 // pred_fallthru
      _
    // Predicated region
    $region30: #{tpu_custom_call.1} parent=1 // pred_check
      _
    $region31: #{tpu_custom_call.1} parent=1 // pred_check_branch
      %158 = sbr.rel (0) target = $region33
    $region32: #{tpu_custom_call.1} parent=1 // pred_region
      %159 = dma.done [#allocation4], 128
    $region33: #{tpu_custom_call.1} parent=1 // pred_fallthru
      _
    %160 = vsyncpa [#allocation3], 1
    %161 = vsyncpa [#allocation6], 1
    %162 = vsyncpa [#allocation4], 1

</llo_original>
